<compile_context>
chip_gen: v7x
topology: tpu7x:2x2x1
jax: 0.10.0
libtpu: 0.0.40
codegen_flags: <defaults>
</compile_context>

<pallas_src>
import functools

import jax
import jax.numpy as jnp
import numpy as np
from jax import lax
from jax.experimental import pallas as pl
from jax.experimental.pallas import tpu as pltpu

_MIB = 1 << 20


def _round_up(v, m):
    return -(-v // m) * m


# ---------------------------------------------------------------------------
# Path A: all layer parameters resident in VMEM; single kernel invocation with
# an unrolled in-kernel layer loop (no grid -> no per-step overhead).
# ---------------------------------------------------------------------------
def _make_resident_kernel(connectivity, n_layers, d, compute_dtype):

    def linear(act_f32, w, b):
        return (
            jnp.dot(act_f32.astype(compute_dtype), w,
                    preferred_element_type=jnp.float32)
            + b.astype(jnp.float32)
        )

    def kernel(x_ref, w_ref, b_ref, o_ref):
        cur = x_ref[...].astype(jnp.float32)

        # Layer 0: no residual / highway combine; for highway only the layer
        # half of the fused [W | Wg] weight is needed.
        w0 = w_ref[0]
        b0 = b_ref[0]
        if connectivity == "highway":
            cur = linear(cur, w0[:, :d], b0[:, :d])
        else:
            cur = linear(cur, w0, b0)

        def body(l, carry):
            if connectivity == "sequential":
                return linear(carry, w_ref[l], b_ref[l])
            elif connectivity == "residual":
                return linear(carry, w_ref[l], b_ref[l]) + carry
            else:  # highway: fused [W | Wg] -> one (d, 2d) matmul, then split
                full = linear(carry, w_ref[l], b_ref[l])
                new_out = full[:, :d]
                gate = jax.nn.sigmoid(full[:, d:])
                return gate * carry + (1.0 - gate) * new_out

        if n_layers > 1:
            cur = lax.fori_loop(1, n_layers, body, cur, unroll=True)

        o_ref[...] = cur.astype(o_ref.dtype)

    return kernel


# ---------------------------------------------------------------------------
# Path B: weight-streaming path; grid=(n_layers,) ("arbitrary" sequential
# loop), per-layer weight/bias blocks auto-double-buffered by BlockSpec.
# ---------------------------------------------------------------------------
def _make_streaming_kernel(connectivity, d, compute_dtype, acc_in_out):

    def kernel(x_ref, w_ref, b_ref, o_ref, *scratch):
        state = o_ref if acc_in_out else scratch[0]
        layer = pl.program_id(0)
        n_layers = pl.num_programs(0)

        @pl.when(layer == 0)
        def _():
            x = x_ref[...].astype(compute_dtype)
            if connectivity == "highway":
                # Only the layer half of [W | Wg] is needed at layer 0.
                new = (jnp.dot(x, w_ref[:, :d],
                               preferred_element_type=jnp.float32)
                       + b_ref[:, :d].astype(jnp.float32))
            else:
                new = (jnp.dot(x, w_ref[...],
                               preferred_element_type=jnp.float32)
                       + b_ref[...].astype(jnp.float32))
            state[...] = new.astype(state.dtype)

        @pl.when(layer > 0)
        def _():
            cur = state[...].astype(jnp.float32)
            full = (jnp.dot(cur.astype(compute_dtype), w_ref[...],
                            preferred_element_type=jnp.float32)
                    + b_ref[...].astype(jnp.float32))
            if connectivity == "sequential":
                nxt = full
            elif connectivity == "residual":
                nxt = full + cur
            else:  # highway
                new_out = full[:, :d]
                gate = jax.nn.sigmoid(full[:, d:])
                nxt = gate * cur + (1.0 - gate) * new_out
            state[...] = nxt.astype(state.dtype)

        if not acc_in_out:
            @pl.when(layer == n_layers - 1)
            def _():
                o_ref[...] = state[...].astype(o_ref.dtype)

    return kernel


@functools.partial(jax.jit, static_argnames=("connectivity", "mode"))
def network_forward(x_nchw, weights, biases, gate_weights=None,
                    gate_biases=None, *, connectivity="sequential",
                    mode="auto"):
    """Flatten NCHW -> (N, D) (out.view(N, -1)) and run the fused layer stack."""
    if connectivity not in ("sequential", "residual", "highway"):
        raise NotImplementedError(connectivity)

    n = x_nchw.shape[0]
    x = x_nchw.reshape(n, -1)
    d = x.shape[1]
    n_layers = weights.shape[0]
    assert weights.shape == (n_layers, d, d)
    assert biases.shape == (n_layers, 1, d)

    if connectivity == "highway":
        assert gate_weights is not None and gate_biases is not None
        # Fuse layer + gate params -> one (d, 2d) matmul per layer.
        w = jnp.concatenate([weights, gate_weights], axis=2)   # (L, d, 2d)
        b = jnp.concatenate([biases, gate_biases], axis=2)     # (L, 1, 2d)
    else:
        # Gate params are never streamed for sequential / residual.
        w, b = weights, biases
    d_out = w.shape[2]
    compute_dtype = w.dtype

    # Pad batch to a sublane multiple so the output store is not masked and
    # the streamed weight is amortized over >= 8 MXU rows.
    n_pad = max(8, _round_up(n, 8))
    if n_pad != n:
        x = jnp.pad(x, ((0, n_pad - n), (0, 0)))

    x_bytes = jnp.dtype(x.dtype).itemsize
    w_bytes = w.size * jnp.dtype(w.dtype).itemsize
    b_bytes = b.size * jnp.dtype(b.dtype).itemsize
    act_bytes = n_pad * d * x_bytes

    resident_bytes = w_bytes + b_bytes + 2 * act_bytes
    use_resident = (mode == "resident") or (
        mode == "auto" and resident_bytes <= 40 * _MIB)

    if use_resident:
        vmem_limit = min(max(resident_bytes + 8 * _MIB, 16 * _MIB), 128 * _MIB)
        kernel = _make_resident_kernel(connectivity, n_layers, d, compute_dtype)
        out = pl.pallas_call(
            kernel,
            out_shape=jax.ShapeDtypeStruct((n_pad, d), x.dtype),
            in_specs=[
                pl.BlockSpec(memory_space=pltpu.MemorySpace.VMEM),
                pl.BlockSpec(memory_space=pltpu.MemorySpace.VMEM),
                pl.BlockSpec(memory_space=pltpu.MemorySpace.VMEM),
            ],
            out_specs=pl.BlockSpec(memory_space=pltpu.MemorySpace.VMEM),
            compiler_params=pltpu.CompilerParams(vmem_limit_bytes=vmem_limit),
        )(x, w, b)
    else:
        acc_in_out = jnp.dtype(x.dtype) == jnp.dtype(jnp.float32)
        per_step_bytes = (
            2 * d * d_out * jnp.dtype(w.dtype).itemsize   # double-buffered W
            + 2 * d_out * jnp.dtype(b.dtype).itemsize     # double-buffered b
            + 4 * act_bytes                               # x / out blocks
            + (0 if acc_in_out else n_pad * d * 4))       # f32 state scratch
        vmem_limit = min(max(per_step_bytes + 8 * _MIB, 16 * _MIB), 128 * _MIB)
        kernel = _make_streaming_kernel(connectivity, d, compute_dtype,
                                        acc_in_out)
        scratch_shapes = ([] if acc_in_out
                          else [pltpu.VMEM((n_pad, d), jnp.float32)])
        out = pl.pallas_call(
            kernel,
            out_shape=jax.ShapeDtypeStruct((n_pad, d), x.dtype),
            grid_spec=pltpu.PrefetchScalarGridSpec(
                num_scalar_prefetch=0,
                grid=(n_layers,),
                in_specs=[
                    # resident input activations (only read at layer 0)
                    pl.BlockSpec((n_pad, d), lambda l: (0, 0)),
                    # per-layer weight (d, d_out), layer axis squeezed
                    pl.BlockSpec((pl.Squeezed(), d, d_out),
                                 lambda l: (l, 0, 0)),
                    # per-layer bias (1, d_out)
                    pl.BlockSpec((pl.Squeezed(), 1, d_out),
                                 lambda l: (l, 0, 0)),
                ],
                out_specs=pl.BlockSpec((n_pad, d), lambda l: (0, 0)),
                scratch_shapes=scratch_shapes,
            ),
            compiler_params=pltpu.CompilerParams(
                dimension_semantics=("arbitrary",),
                vmem_limit_bytes=vmem_limit,
            ),
        )(x, w, b)

    return out[:n]


def network_forward_ref(x_nchw, weights, biases, gate_weights, gate_biases,
                        connectivity):
    """Pure-JAX reference mirroring the PyTorch forward (same compute dtype)."""
    n = x_nchw.shape[0]
    cdt = weights.dtype
    out = x_nchw.reshape(n, -1).astype(jnp.float32)
    for ind in range(weights.shape[0]):
        new_out = (jnp.dot(out.astype(cdt), weights[ind],
                           preferred_element_type=jnp.float32)
                   + biases[ind, 0].astype(jnp.float32))
        if connectivity == "sequential":
            out = new_out
        elif connectivity == "residual":
            out = new_out if ind == 0 else new_out + out
        elif connectivity == "highway":
            if ind == 0:
                out = new_out
            else:
                gate = jax.nn.sigmoid(
                    jnp.dot(out.astype(cdt), gate_weights[ind],
                            preferred_element_type=jnp.float32)
                    + gate_biases[ind, 0].astype(jnp.float32))
                out = gate * out + (1.0 - gate) * new_out
        else:
            raise NotImplementedError(connectivity)
    return out


if __name__ == "__main__":
    # x is NCHW [2, 4, 8, 8] -> flattened feature dim D = 256.
    N, C, H, W = 2, 4, 8, 8
    D = C * H * W
    N_LAYERS = 3

    key = jax.random.PRNGKey(0)
    kx, kw, kb, kgw, kgb = jax.random.split(key, 5)

    scale = float(1.0 / np.sqrt(D))
    x = jax.random.normal(kx, (N, C, H, W), dtype=jnp.float32)
    # Parameters are stored / streamed in bf16 (f32 accumulation in-kernel).
    weights = (jax.random.normal(kw, (N_LAYERS, D, D), jnp.float32)
               * scale).astype(jnp.bfloat16)
    biases = jax.random.normal(kb, (N_LAYERS, 1, D), jnp.float32) * 0.1
    gate_weights = (jax.random.normal(kgw, (N_LAYERS, D, D), jnp.float32)
                    * scale).astype(jnp.bfloat16)
    gate_biases = jax.random.normal(kgb, (N_LAYERS, 1, D), jnp.float32) * 0.1

    ok = True
    for conn in ("sequential", "residual", "highway"):
        ref = np.asarray(network_forward_ref(
            x, weights, biases, gate_weights, gate_biases, conn))
        for mode in ("resident", "streaming"):
            out = network_forward(x, weights, biases, gate_weights,
                                  gate_biases, connectivity=conn, mode=mode)
            out = np.asarray(jax.block_until_ready(out))
            if not np.allclose(out, ref, rtol=1e-2, atol=1e-2):
                ok = False
                err = float(np.max(np.abs(out - ref)))
                print(f"MISMATCH connectivity={conn} mode={mode} "
                      f"max_abs_err={err}")

    if ok:
        print("KERNEL_OK")
</pallas_src>

<mosaic_0001>
module attributes {stable_mosaic.version = 11 : i64} {
  func.func @kernel(%arg0: memref<8x256xf32, #tpu.memory_space<vmem>>, %arg1: memref<3x256x256xbf16, #tpu.memory_space<vmem>>, %arg2: memref<3x1x256xf32, #tpu.memory_space<vmem>>, %arg3: memref<8x256xf32, #tpu.memory_space<vmem>>) attributes {dimension_semantics = [], scalar_prefetch = 0 : i64, scratch_operands = 0 : i64, tpu.core_type = #tpu.core_type<tc>} {
    %c0 = arith.constant 0 : index
    %c0_0 = arith.constant 0 : index
    %0 = vector.load %arg0[%c0, %c0_0] : memref<8x256xf32, #tpu.memory_space<vmem>>, vector<8x256xf32>
    %c0_1 = arith.constant 0 : index
    %c0_2 = arith.constant 0 : index
    %c0_3 = arith.constant 0 : index
    %1 = vector.load %arg1[%c0_1, %c0_2, %c0_3] : memref<3x256x256xbf16, #tpu.memory_space<vmem>>, vector<1x256x256xbf16>
    %2 = vector.shape_cast %1 : vector<1x256x256xbf16> to vector<256x256xbf16>
    %c0_4 = arith.constant 0 : index
    %c0_5 = arith.constant 0 : index
    %c0_6 = arith.constant 0 : index
    %3 = vector.load %arg2[%c0_4, %c0_5, %c0_6] : memref<3x1x256xf32, #tpu.memory_space<vmem>>, vector<1x1x256xf32>
    %4 = vector.shape_cast %3 : vector<1x1x256xf32> to vector<1x256xf32>
    %5 = arith.truncf %0 : vector<8x256xf32> to vector<8x256xbf16>
    %cst = arith.constant dense<0.000000e+00> : vector<8x256xf32>
    %6 = tpu.matmul %5, %2, %cst {dimension_numbers = #tpu.dot_dimension_numbers<[1], [0], [0], [1], [0, 0, 1, 1], [], []>} : vector<8x256xbf16>, vector<256x256xbf16>, vector<8x256xf32> -> vector<8x256xf32>
    %7 = vector.broadcast %4 : vector<1x256xf32> to vector<8x256xf32>
    %8 = arith.addf %6, %7 : vector<8x256xf32>
    %c1_i32 = arith.constant 1 : i32
    %9 = arith.index_cast %c1_i32 : i32 to index
    %c0_7 = arith.constant 0 : index
    %c0_8 = arith.constant 0 : index
    %10 = vector.load %arg1[%9, %c0_7, %c0_8] : memref<3x256x256xbf16, #tpu.memory_space<vmem>>, vector<1x256x256xbf16>
    %11 = vector.shape_cast %10 : vector<1x256x256xbf16> to vector<256x256xbf16>
    %12 = arith.index_cast %c1_i32 : i32 to index
    %c0_9 = arith.constant 0 : index
    %c0_10 = arith.constant 0 : index
    %13 = vector.load %arg2[%12, %c0_9, %c0_10] : memref<3x1x256xf32, #tpu.memory_space<vmem>>, vector<1x1x256xf32>
    %14 = vector.shape_cast %13 : vector<1x1x256xf32> to vector<1x256xf32>
    %15 = arith.truncf %8 : vector<8x256xf32> to vector<8x256xbf16>
    %cst_11 = arith.constant dense<0.000000e+00> : vector<8x256xf32>
    %16 = tpu.matmul %15, %11, %cst_11 {dimension_numbers = #tpu.dot_dimension_numbers<[1], [0], [0], [1], [0, 0, 1, 1], [], []>} : vector<8x256xbf16>, vector<256x256xbf16>, vector<8x256xf32> -> vector<8x256xf32>
    %17 = vector.broadcast %14 : vector<1x256xf32> to vector<8x256xf32>
    %18 = arith.addf %16, %17 : vector<8x256xf32>
    %c2_i32 = arith.constant 2 : i32
    %19 = arith.index_cast %c2_i32 : i32 to index
    %c0_12 = arith.constant 0 : index
    %c0_13 = arith.constant 0 : index
    %20 = vector.load %arg1[%19, %c0_12, %c0_13] : memref<3x256x256xbf16, #tpu.memory_space<vmem>>, vector<1x256x256xbf16>
    %21 = vector.shape_cast %20 : vector<1x256x256xbf16> to vector<256x256xbf16>
    %22 = arith.index_cast %c2_i32 : i32 to index
    %c0_14 = arith.constant 0 : index
    %c0_15 = arith.constant 0 : index
    %23 = vector.load %arg2[%22, %c0_14, %c0_15] : memref<3x1x256xf32, #tpu.memory_space<vmem>>, vector<1x1x256xf32>
    %24 = vector.shape_cast %23 : vector<1x1x256xf32> to vector<1x256xf32>
    %25 = arith.truncf %18 : vector<8x256xf32> to vector<8x256xbf16>
    %cst_16 = arith.constant dense<0.000000e+00> : vector<8x256xf32>
    %26 = tpu.matmul %25, %21, %cst_16 {dimension_numbers = #tpu.dot_dimension_numbers<[1], [0], [0], [1], [0, 0, 1, 1], [], []>} : vector<8x256xbf16>, vector<256x256xbf16>, vector<8x256xf32> -> vector<8x256xf32>
    %27 = vector.broadcast %24 : vector<1x256xf32> to vector<8x256xf32>
    %28 = arith.addf %26, %27 : vector<8x256xf32>
    %c2_i32_17 = arith.constant 2 : i32
    %c0_18 = arith.constant 0 : index
    %c0_19 = arith.constant 0 : index
    %29 = vector.load %arg3[%c0_18, %c0_19] : memref<8x256xf32, #tpu.memory_space<vmem>>, vector<8x256xf32>
    tpu.vector_store %arg3[%c0_18, %c0_19], %28 {strides = array<i32>} : memref<8x256xf32, #tpu.memory_space<vmem>>, vector<8x256xf32>,
    return
  }
}

</mosaic_0001>

<llo_original>
// kernel: network_forward.1
$region0: #{network_forward.1}
  #allocation0 [shape = 'u32[]', space=smem, size = 0x4, offset = 0x4, fixed_abs, tag = 'smem constant byte address 0x4 - core index']
  #allocation1 [shape = 'u32[144,128]{1,0:T(1,128)}', space=vmem, size = 0x12000, scoped, tag = 'internal scratch']
  %s0 = inlined_call_operand.vmem [shape: f32[8,256], index: 0, kind: input, shape index: {}]
  %s1 = inlined_call_operand.hbm [shape: bf16[3,256,256], index: 1, kind: input, shape index: {}]
  %s2 = inlined_call_operand.vmem [shape: f32[3,1,256], index: 2, kind: input, shape index: {}]
  %s3 = inlined_call_operand.vmem [shape: f32[8,256], index: 3, kind: output, shape index: {}]
  %s4 = sld [smem:[#allocation0]]
  $region26: #{network_forward.1} parent=0
    _
  %s6 = ssub.s32 1, %s4
  %s7 = scalar_select 0, %s6, %s4
  $region1: #{network_forward.1} parent=0
    #allocation2 [shape = 'u8[393216]{0}', space=vmem, size = 0x60000, scoped, tag = 'input window, operand 1, single buffered']
    #allocation3 [shape = 's32[1]{0}', space=sflag, size = 0x4, scoped, tag = 'scoped memory for network_forward.1']
    %8 = vsyncpa [#allocation3], 0
    // Predicated region
    $region2: #{network_forward.1} parent=1 // pred_check
      _
    $region3: #{network_forward.1} parent=1 // pred_check_branch
      %10 = sbr.rel (0) target = $region5
    $region4: #{network_forward.1} parent=1 // pred_region
      _
    $region5: #{network_forward.1} parent=1 // pred_fallthru
      _
    // Predicated region
    $region6: #{network_forward.1} parent=1 // pred_check
      _
    $region7: #{network_forward.1} parent=1 // pred_check_branch
      %12 = sbr.rel (0) target = $region9
    $region8: #{network_forward.1} parent=1 // pred_region
      %s14 = ssub.s32 12288, 12288
      %15 = vsyncadd [#allocation3], %s14
      %s16 = sshll.u32 [#allocation2], 4
      %s17 = int_to_ptr.vmem [resolvable:$true] %s16
      %22 = dma.hbm_to_vmem [thread:$0]  %s1, 12288, %s17, [#allocation3], 128, 128, 8
    $region9: #{network_forward.1} parent=1 // pred_fallthru
      _
    // Predicated region
    $region10: #{network_forward.1} parent=1 // pred_check
      _
    $region11: #{network_forward.1} parent=1 // pred_check_branch
      %24 = sbr.rel (0) target = $region13
    $region12: #{network_forward.1} parent=1 // pred_region
      _
    $region13: #{network_forward.1} parent=1 // pred_fallthru
      _
    // Predicated region
    $region14: #{network_forward.1} parent=1 // pred_check
      _
    $region15: #{network_forward.1} parent=1 // pred_check_branch
      %26 = sbr.rel (0) target = $region17
    $region16: #{network_forward.1} parent=1 // pred_region
      %27 = dma.done [#allocation3], 12288
    $region17: #{network_forward.1} parent=1 // pred_fallthru
      _
    %v28 = vld [vmem:[%s0] sm:$0xff]
    %v29 = vld [vmem:[%s0 + $0x8] sm:$0xff]
    %v30 = vld [vmem:[#allocation2] sm:$0xff]
    %v31 = vld [vmem:[#allocation2 + $0x8] sm:$0xff]
    %v32 = vld [vmem:[#allocation2 + $0x10] sm:$0xff]
    %v33 = vld [vmem:[#allocation2 + $0x18] sm:$0xff]
    %v34 = vld [vmem:[#allocation2 + $0x20] sm:$0xff]
    %v35 = vld [vmem:[#allocation2 + $0x28] sm:$0xff]
    %v36 = vld [vmem:[#allocation2 + $0x30] sm:$0xff]
    %v37 = vld [vmem:[#allocation2 + $0x38] sm:$0xff]
    %v38 = vld [vmem:[#allocation2 + $0x40] sm:$0xff]
    %v39 = vld [vmem:[#allocation2 + $0x48] sm:$0xff]
    %v40 = vld [vmem:[#allocation2 + $0x50] sm:$0xff]
    %v41 = vld [vmem:[#allocation2 + $0x58] sm:$0xff]
    %v42 = vld [vmem:[#allocation2 + $0x60] sm:$0xff]
    %v43 = vld [vmem:[#allocation2 + $0x68] sm:$0xff]
    %v44 = vld [vmem:[#allocation2 + $0x70] sm:$0xff]
    %v45 = vld [vmem:[#allocation2 + $0x78] sm:$0xff]
    %v46 = vld [vmem:[#allocation2 + $0x80] sm:$0xff]
    %v47 = vld [vmem:[#allocation2 + $0x88] sm:$0xff]
    %v48 = vld [vmem:[#allocation2 + $0x90] sm:$0xff]
    %v49 = vld [vmem:[#allocation2 + $0x98] sm:$0xff]
    %v50 = vld [vmem:[#allocation2 + $0xa0] sm:$0xff]
    %v51 = vld [vmem:[#allocation2 + $0xa8] sm:$0xff]
    %v52 = vld [vmem:[#allocation2 + $0xb0] sm:$0xff]
    %v53 = vld [vmem:[#allocation2 + $0xb8] sm:$0xff]
    %v54 = vld [vmem:[#allocation2 + $0xc0] sm:$0xff]
    %v55 = vld [vmem:[#allocation2 + $0xc8] sm:$0xff]
    %v56 = vld [vmem:[#allocation2 + $0xd0] sm:$0xff]
    %v57 = vld [vmem:[#allocation2 + $0xd8] sm:$0xff]
    %v58 = vld [vmem:[#allocation2 + $0xe0] sm:$0xff]
    %v59 = vld [vmem:[#allocation2 + $0xe8] sm:$0xff]
    %v60 = vld [vmem:[#allocation2 + $0xf0] sm:$0xff]
    %v61 = vld [vmem:[#allocation2 + $0xf8] sm:$0xff]
    %v62 = vld [vmem:[%s2] sm:$0x3]
    %v63 = vpack.c.bf16 %v28, %v28
    %v64 = vpack.c.bf16 %v29, %v29
    %v66 = vlaneseq
    %v67 = vshrl.u32 %v66, 7
    %v68 = vsub.s32 0, %v67
    %v69 = vrot.slane %v62, %v68
    %v70 = vlaneseq
    %v71 = vshrl.u32 %v70, 7
    %v72 = vsub.s32 1, %v71
    %v73 = vrot.slane %v62, %v72
    %v108 = vunpack.c.l.b16 %v30
    %v109 = vunpack.c.h.b16 %v30
    %v110 = vunpack.c.l.b16 %v31
    %v111 = vunpack.c.h.b16 %v31
    %v112 = vunpack.c.l.b16 %v32
    %v113 = vunpack.c.h.b16 %v32
    %v114 = vunpack.c.l.b16 %v33
    %v115 = vunpack.c.h.b16 %v33
    %v116 = vunpack.c.l.b16 %v34
    %v117 = vunpack.c.h.b16 %v34
    %v118 = vunpack.c.l.b16 %v35
    %v119 = vunpack.c.h.b16 %v35
    %v120 = vunpack.c.l.b16 %v36
    %v121 = vunpack.c.h.b16 %v36
    %v122 = vunpack.c.l.b16 %v37
    %v123 = vunpack.c.h.b16 %v37
    %v124 = vunpack.c.l.b16 %v38
    %v125 = vunpack.c.h.b16 %v38
    %v126 = vunpack.c.l.b16 %v39
    %v127 = vunpack.c.h.b16 %v39
    %v128 = vunpack.c.l.b16 %v40
    %v129 = vunpack.c.h.b16 %v40
    %v130 = vunpack.c.l.b16 %v41
    %v131 = vunpack.c.h.b16 %v41
    %v132 = vunpack.c.l.b16 %v42
    %v133 = vunpack.c.h.b16 %v42
    %v134 = vunpack.c.l.b16 %v43
    %v135 = vunpack.c.h.b16 %v43
    %v136 = vunpack.c.l.b16 %v44
    %v137 = vunpack.c.h.b16 %v44
    %v138 = vunpack.c.l.b16 %v45
    %v139 = vunpack.c.h.b16 %v45
    %v140 = vunpack.c.l.b16 %v46
    %v141 = vunpack.c.h.b16 %v46
    %v142 = vunpack.c.l.b16 %v47
    %v143 = vunpack.c.h.b16 %v47
    %v144 = vunpack.c.l.b16 %v48
    %v145 = vunpack.c.h.b16 %v48
    %v146 = vunpack.c.l.b16 %v49
    %v147 = vunpack.c.h.b16 %v49
    %v148 = vunpack.c.l.b16 %v50
    %v149 = vunpack.c.h.b16 %v50
    %v150 = vunpack.c.l.b16 %v51
    %v151 = vunpack.c.h.b16 %v51
    %v152 = vunpack.c.l.b16 %v52
    %v153 = vunpack.c.h.b16 %v52
    %v154 = vunpack.c.l.b16 %v53
    %v155 = vunpack.c.h.b16 %v53
    %v156 = vunpack.c.l.b16 %v54
    %v157 = vunpack.c.h.b16 %v54
    %v158 = vunpack.c.l.b16 %v55
    %v159 = vunpack.c.h.b16 %v55
    %v160 = vunpack.c.l.b16 %v56
    %v161 = vunpack.c.h.b16 %v56
    %v162 = vunpack.c.l.b16 %v57
    %v163 = vunpack.c.h.b16 %v57
    %v164 = vunpack.c.l.b16 %v58
    %v165 = vunpack.c.h.b16 %v58
    %v166 = vunpack.c.l.b16 %v59
    %v167 = vunpack.c.h.b16 %v59
    %v168 = vunpack.c.l.b16 %v60
    %v169 = vunpack.c.h.b16 %v60
    %v170 = vunpack.c.l.b16 %v61
    %v171 = vunpack.c.h.b16 %v61
    %v172 = vpack.c.b16 %v110, %v108
    %v173 = vpack.c.b16 %v111, %v109
    %v174 = vpack.c.b16 %v114, %v112
    %v175 = vpack.c.b16 %v115, %v113
    %v176 = vpack.c.b16 %v118, %v116
    %v177 = vpack.c.b16 %v119, %v117
    %v178 = vpack.c.b16 %v122, %v120
    %v179 = vpack.c.b16 %v123, %v121
    %v180 = vpack.c.b16 %v126, %v124
    %v181 = vpack.c.b16 %v127, %v125
    %v182 = vpack.c.b16 %v130, %v128
    %v183 = vpack.c.b16 %v131, %v129
    %v184 = vpack.c.b16 %v134, %v132
    %v185 = vpack.c.b16 %v135, %v133
    %v186 = vpack.c.b16 %v138, %v136
    %v187 = vpack.c.b16 %v139, %v137
    %v188 = vpack.c.b16 %v142, %v140
    %v189 = vpack.c.b16 %v143, %v141
    %v190 = vpack.c.b16 %v146, %v144
    %v191 = vpack.c.b16 %v147, %v145
    %v192 = vpack.c.b16 %v150, %v148
    %v193 = vpack.c.b16 %v151, %v149
    %v194 = vpack.c.b16 %v154, %v152
    %v195 = vpack.c.b16 %v155, %v153
    %v196 = vpack.c.b16 %v158, %v156
    %v197 = vpack.c.b16 %v159, %v157
    %v198 = vpack.c.b16 %v162, %v160
    %v199 = vpack.c.b16 %v163, %v161
    %v200 = vpack.c.b16 %v166, %v164
    %v201 = vpack.c.b16 %v167, %v165
    %v202 = vpack.c.b16 %v170, %v168
    %v203 = vpack.c.b16 %v171, %v169
    %236 = vmatprep.subr.bf16.mxu0 %v173
    %237 = vmatpush1.bf16.msra.mxu0 %v172
    %238 = vmatprep.subr.bf16.mxu0 %v175
    %239 = vmatpush1.bf16.msra.mxu0 %v174
    %240 = vmatprep.subr.bf16.mxu0 %v177
    %241 = vmatpush1.bf16.msra.mxu0 %v176
    %242 = vmatprep.subr.bf16.mxu0 %v179
    %243 = vmatpush1.bf16.msra.mxu0 %v178
    %244 = vmatprep.subr.bf16.mxu0 %v181
    %245 = vmatpush1.bf16.msra.mxu0 %v180
    %246 = vmatprep.subr.bf16.mxu0 %v183
    %247 = vmatpush1.bf16.msra.mxu0 %v182
    %248 = vmatprep.subr.bf16.mxu0 %v185
    %249 = vmatpush1.bf16.msra.mxu0 %v184
    %250 = vmatprep.subr.bf16.mxu0 %v187
    %251 = vmatpush1.bf16.msra.mxu0 %v186
    %252 = vmatprep.subr.bf16.mxu0 %v189
    %253 = vmatpush1.bf16.msra.mxu0 %v188
    %254 = vmatprep.subr.bf16.mxu0 %v191
    %255 = vmatpush1.bf16.msra.mxu0 %v190
    %256 = vmatprep.subr.bf16.mxu0 %v193
    %257 = vmatpush1.bf16.msra.mxu0 %v192
    %258 = vmatprep.subr.bf16.mxu0 %v195
    %259 = vmatpush1.bf16.msra.mxu0 %v194
    %260 = vmatprep.subr.bf16.mxu0 %v197
    %261 = vmatpush1.bf16.msra.mxu0 %v196
    %262 = vmatprep.subr.bf16.mxu0 %v199
    %263 = vmatpush1.bf16.msra.mxu0 %v198
    %264 = vmatprep.subr.bf16.mxu0 %v201
    %265 = vmatpush1.bf16.msra.mxu0 %v200
    %266 = vmatprep.subr.bf16.mxu0 %v203
    %267 = vmatpush1.bf16.msra.mxu0 %v202
    %268 = vmatprep.mubr.bf16.mxu0 %v64
    %269 = vmatmul.mubr.bf16.gmra.mrb[0].mxu0 %v63
    %v270 = vpop.f32.mrb[0].mxu0
    %v271 = vadd.f32 %v69, %v270
    %v272 = vpop.f32.mrb[0].mxu0
    %v273 = vadd.f32 %v73, %v272
    %v274 = vpop.f32.mrb[0].mxu0
    %v275 = vpop.f32.mrb[0].mxu0
    %276 = vdwg.mxu0
    %s277 = scalar_lea.vmem [#allocation2], 256
    %v278 = vld [vmem:[%s277] sm:$0xff]
    %v279 = vld [vmem:[%s277 + $0x8] sm:$0xff]
    %v280 = vld [vmem:[%s277 + $0x10] sm:$0xff]
    %v281 = vld [vmem:[%s277 + $0x18] sm:$0xff]
    %v282 = vld [vmem:[%s277 + $0x20] sm:$0xff]
    %v283 = vld [vmem:[%s277 + $0x28] sm:$0xff]
    %v284 = vld [vmem:[%s277 + $0x30] sm:$0xff]
    %v285 = vld [vmem:[%s277 + $0x38] sm:$0xff]
    %v286 = vld [vmem:[%s277 + $0x40] sm:$0xff]
    %v287 = vld [vmem:[%s277 + $0x48] sm:$0xff]
    %v288 = vld [vmem:[%s277 + $0x50] sm:$0xff]
    %v289 = vld [vmem:[%s277 + $0x58] sm:$0xff]
    %v290 = vld [vmem:[%s277 + $0x60] sm:$0xff]
    %v291 = vld [vmem:[%s277 + $0x68] sm:$0xff]
    %v292 = vld [vmem:[%s277 + $0x70] sm:$0xff]
    %v293 = vld [vmem:[%s277 + $0x78] sm:$0xff]
    %v294 = vld [vmem:[%s277 + $0x80] sm:$0xff]
    %v295 = vld [vmem:[%s277 + $0x88] sm:$0xff]
    %v296 = vld [vmem:[%s277 + $0x90] sm:$0xff]
    %v297 = vld [vmem:[%s277 + $0x98] sm:$0xff]
    %v298 = vld [vmem:[%s277 + $0xa0] sm:$0xff]
    %v299 = vld [vmem:[%s277 + $0xa8] sm:$0xff]
    %v300 = vld [vmem:[%s277 + $0xb0] sm:$0xff]
    %v301 = vld [vmem:[%s277 + $0xb8] sm:$0xff]
    %v302 = vld [vmem:[%s277 + $0xc0] sm:$0xff]
    %v303 = vld [vmem:[%s277 + $0xc8] sm:$0xff]
    %v304 = vld [vmem:[%s277 + $0xd0] sm:$0xff]
    %v305 = vld [vmem:[%s277 + $0xd8] sm:$0xff]
    %v306 = vld [vmem:[%s277 + $0xe0] sm:$0xff]
    %v307 = vld [vmem:[%s277 + $0xe8] sm:$0xff]
    %v308 = vld [vmem:[%s277 + $0xf0] sm:$0xff]
    %v309 = vld [vmem:[%s277 + $0xf8] sm:$0xff]
    %s310 = scalar_lea.vmem %s2, 2
    %v311 = vld [vmem:[%s310] sm:$0x3]
    %v312 = vpack.c.bf16 %v271, %v271
    %v313 = vpack.c.bf16 %v273, %v273
    %v315 = vlaneseq
    %v316 = vshrl.u32 %v315, 7
    %v317 = vsub.s32 0, %v316
    %v318 = vrot.slane %v311, %v317
    %v319 = vlaneseq
    %v320 = vshrl.u32 %v319, 7
    %v321 = vsub.s32 1, %v320
    %v322 = vrot.slane %v311, %v321
    %v357 = vunpack.c.l.b16 %v278
    %v358 = vunpack.c.h.b16 %v278
    %v359 = vunpack.c.l.b16 %v279
    %v360 = vunpack.c.h.b16 %v279
    %v361 = vunpack.c.l.b16 %v280
    %v362 = vunpack.c.h.b16 %v280
    %v363 = vunpack.c.l.b16 %v281
    %v364 = vunpack.c.h.b16 %v281
    %v365 = vunpack.c.l.b16 %v282
    %v366 = vunpack.c.h.b16 %v282
    %v367 = vunpack.c.l.b16 %v283
    %v368 = vunpack.c.h.b16 %v283
    %v369 = vunpack.c.l.b16 %v284
    %v370 = vunpack.c.h.b16 %v284
    %v371 = vunpack.c.l.b16 %v285
    %v372 = vunpack.c.h.b16 %v285
    %v373 = vunpack.c.l.b16 %v286
    %v374 = vunpack.c.h.b16 %v286
    %v375 = vunpack.c.l.b16 %v287
    %v376 = vunpack.c.h.b16 %v287
    %v377 = vunpack.c.l.b16 %v288
    %v378 = vunpack.c.h.b16 %v288
    %v379 = vunpack.c.l.b16 %v289
    %v380 = vunpack.c.h.b16 %v289
    %v381 = vunpack.c.l.b16 %v290
    %v382 = vunpack.c.h.b16 %v290
    %v383 = vunpack.c.l.b16 %v291
    %v384 = vunpack.c.h.b16 %v291
    %v385 = vunpack.c.l.b16 %v292
    %v386 = vunpack.c.h.b16 %v292
    %v387 = vunpack.c.l.b16 %v293
    %v388 = vunpack.c.h.b16 %v293
    %v389 = vunpack.c.l.b16 %v294
    %v390 = vunpack.c.h.b16 %v294
    %v391 = vunpack.c.l.b16 %v295
    %v392 = vunpack.c.h.b16 %v295
    %v393 = vunpack.c.l.b16 %v296
    %v394 = vunpack.c.h.b16 %v296
    %v395 = vunpack.c.l.b16 %v297
    %v396 = vunpack.c.h.b16 %v297
    %v397 = vunpack.c.l.b16 %v298
    %v398 = vunpack.c.h.b16 %v298
    %v399 = vunpack.c.l.b16 %v299
    %v400 = vunpack.c.h.b16 %v299
    %v401 = vunpack.c.l.b16 %v300
    %v402 = vunpack.c.h.b16 %v300
    %v403 = vunpack.c.l.b16 %v301
    %v404 = vunpack.c.h.b16 %v301
    %v405 = vunpack.c.l.b16 %v302
    %v406 = vunpack.c.h.b16 %v302
    %v407 = vunpack.c.l.b16 %v303
    %v408 = vunpack.c.h.b16 %v303
    %v409 = vunpack.c.l.b16 %v304
    %v410 = vunpack.c.h.b16 %v304
    %v411 = vunpack.c.l.b16 %v305
    %v412 = vunpack.c.h.b16 %v305
    %v413 = vunpack.c.l.b16 %v306
    %v414 = vunpack.c.h.b16 %v306
    %v415 = vunpack.c.l.b16 %v307
    %v416 = vunpack.c.h.b16 %v307
    %v417 = vunpack.c.l.b16 %v308
    %v418 = vunpack.c.h.b16 %v308
    %v419 = vunpack.c.l.b16 %v309
    %v420 = vunpack.c.h.b16 %v309
    %v421 = vpack.c.b16 %v359, %v357
    %v422 = vpack.c.b16 %v360, %v358
    %v423 = vpack.c.b16 %v363, %v361
    %v424 = vpack.c.b16 %v364, %v362
    %v425 = vpack.c.b16 %v367, %v365
    %v426 = vpack.c.b16 %v368, %v366
    %v427 = vpack.c.b16 %v371, %v369
    %v428 = vpack.c.b16 %v372, %v370
    %v429 = vpack.c.b16 %v375, %v373
    %v430 = vpack.c.b16 %v376, %v374
    %v431 = vpack.c.b16 %v379, %v377
    %v432 = vpack.c.b16 %v380, %v378
    %v433 = vpack.c.b16 %v383, %v381
    %v434 = vpack.c.b16 %v384, %v382
    %v435 = vpack.c.b16 %v387, %v385
    %v436 = vpack.c.b16 %v388, %v386
    %v437 = vpack.c.b16 %v391, %v389
    %v438 = vpack.c.b16 %v392, %v390
    %v439 = vpack.c.b16 %v395, %v393
    %v440 = vpack.c.b16 %v396, %v394
    %v441 = vpack.c.b16 %v399, %v397
    %v442 = vpack.c.b16 %v400, %v398
    %v443 = vpack.c.b16 %v403, %v401
    %v444 = vpack.c.b16 %v404, %v402
    %v445 = vpack.c.b16 %v407, %v405
    %v446 = vpack.c.b16 %v408, %v406
    %v447 = vpack.c.b16 %v411, %v409
    %v448 = vpack.c.b16 %v412, %v410
    %v449 = vpack.c.b16 %v415, %v413
    %v450 = vpack.c.b16 %v416, %v414
    %v451 = vpack.c.b16 %v419, %v417
    %v452 = vpack.c.b16 %v420, %v418
    %485 = vmatprep.subr.bf16.mxu0 %v422
    %486 = vmatpush1.bf16.msra.mxu0 %v421
    %487 = vmatprep.subr.bf16.mxu0 %v424
    %488 = vmatpush1.bf16.msra.mxu0 %v423
    %489 = vmatprep.subr.bf16.mxu0 %v426
    %490 = vmatpush1.bf16.msra.mxu0 %v425
    %491 = vmatprep.subr.bf16.mxu0 %v428
    %492 = vmatpush1.bf16.msra.mxu0 %v427
    %493 = vmatprep.subr.bf16.mxu0 %v430
    %494 = vmatpush1.bf16.msra.mxu0 %v429
    %495 = vmatprep.subr.bf16.mxu0 %v432
    %496 = vmatpush1.bf16.msra.mxu0 %v431
    %497 = vmatprep.subr.bf16.mxu0 %v434
    %498 = vmatpush1.bf16.msra.mxu0 %v433
    %499 = vmatprep.subr.bf16.mxu0 %v436
    %500 = vmatpush1.bf16.msra.mxu0 %v435
    %501 = vmatprep.subr.bf16.mxu0 %v438
    %502 = vmatpush1.bf16.msra.mxu0 %v437
    %503 = vmatprep.subr.bf16.mxu0 %v440
    %504 = vmatpush1.bf16.msra.mxu0 %v439
    %505 = vmatprep.subr.bf16.mxu0 %v442
    %506 = vmatpush1.bf16.msra.mxu0 %v441
    %507 = vmatprep.subr.bf16.mxu0 %v444
    %508 = vmatpush1.bf16.msra.mxu0 %v443
    %509 = vmatprep.subr.bf16.mxu0 %v446
    %510 = vmatpush1.bf16.msra.mxu0 %v445
    %511 = vmatprep.subr.bf16.mxu0 %v448
    %512 = vmatpush1.bf16.msra.mxu0 %v447
    %513 = vmatprep.subr.bf16.mxu0 %v450
    %514 = vmatpush1.bf16.msra.mxu0 %v449
    %515 = vmatprep.subr.bf16.mxu0 %v452
    %516 = vmatpush1.bf16.msra.mxu0 %v451
    %517 = vmatprep.mubr.bf16.mxu0 %v313
    %518 = vmatmul.mubr.bf16.gmra.mrb[0].mxu0 %v312
    %v519 = vpop.f32.mrb[0].mxu0
    %v520 = vadd.f32 %v318, %v519
    %v521 = vpop.f32.mrb[0].mxu0
    %v522 = vadd.f32 %v322, %v521
    %v523 = vpop.f32.mrb[0].mxu0
    %v524 = vpop.f32.mrb[0].mxu0
    %525 = vdwg.mxu0
    %s526 = scalar_lea.vmem [#allocation2], 512
    %v527 = vld [vmem:[%s526] sm:$0xff]
    %v528 = vld [vmem:[%s526 + $0x8] sm:$0xff]
    %v529 = vld [vmem:[%s526 + $0x10] sm:$0xff]
    %v530 = vld [vmem:[%s526 + $0x18] sm:$0xff]
    %v531 = vld [vmem:[%s526 + $0x20] sm:$0xff]
    %v532 = vld [vmem:[%s526 + $0x28] sm:$0xff]
    %v533 = vld [vmem:[%s526 + $0x30] sm:$0xff]
    %v534 = vld [vmem:[%s526 + $0x38] sm:$0xff]
    %v535 = vld [vmem:[%s526 + $0x40] sm:$0xff]
    %v536 = vld [vmem:[%s526 + $0x48] sm:$0xff]
    %v537 = vld [vmem:[%s526 + $0x50] sm:$0xff]
    %v538 = vld [vmem:[%s526 + $0x58] sm:$0xff]
    %v539 = vld [vmem:[%s526 + $0x60] sm:$0xff]
    %v540 = vld [vmem:[%s526 + $0x68] sm:$0xff]
    %v541 = vld [vmem:[%s526 + $0x70] sm:$0xff]
    %v542 = vld [vmem:[%s526 + $0x78] sm:$0xff]
    %v543 = vld [vmem:[%s526 + $0x80] sm:$0xff]
    %v544 = vld [vmem:[%s526 + $0x88] sm:$0xff]
    %v545 = vld [vmem:[%s526 + $0x90] sm:$0xff]
    %v546 = vld [vmem:[%s526 + $0x98] sm:$0xff]
    %v547 = vld [vmem:[%s526 + $0xa0] sm:$0xff]
    %v548 = vld [vmem:[%s526 + $0xa8] sm:$0xff]
    %v549 = vld [vmem:[%s526 + $0xb0] sm:$0xff]
    %v550 = vld [vmem:[%s526 + $0xb8] sm:$0xff]
    %v551 = vld [vmem:[%s526 + $0xc0] sm:$0xff]
    %v552 = vld [vmem:[%s526 + $0xc8] sm:$0xff]
    %v553 = vld [vmem:[%s526 + $0xd0] sm:$0xff]
    %v554 = vld [vmem:[%s526 + $0xd8] sm:$0xff]
    %v555 = vld [vmem:[%s526 + $0xe0] sm:$0xff]
    %v556 = vld [vmem:[%s526 + $0xe8] sm:$0xff]
    %v557 = vld [vmem:[%s526 + $0xf0] sm:$0xff]
    %v558 = vld [vmem:[%s526 + $0xf8] sm:$0xff]
    %s559 = scalar_lea.vmem %s2, 4
    %v560 = vld [vmem:[%s559] sm:$0x3]
    %v561 = vpack.c.bf16 %v520, %v520
    %v562 = vpack.c.bf16 %v522, %v522
    %v564 = vlaneseq
    %v565 = vshrl.u32 %v564, 7
    %v566 = vsub.s32 0, %v565
    %v567 = vrot.slane %v560, %v566
    %v568 = vlaneseq
    %v569 = vshrl.u32 %v568, 7
    %v570 = vsub.s32 1, %v569
    %v571 = vrot.slane %v560, %v570
    %v606 = vunpack.c.l.b16 %v527
    %v607 = vunpack.c.h.b16 %v527
    %v608 = vunpack.c.l.b16 %v528
    %v609 = vunpack.c.h.b16 %v528
    %v610 = vunpack.c.l.b16 %v529
    %v611 = vunpack.c.h.b16 %v529
    %v612 = vunpack.c.l.b16 %v530
    %v613 = vunpack.c.h.b16 %v530
    %v614 = vunpack.c.l.b16 %v531
    %v615 = vunpack.c.h.b16 %v531
    %v616 = vunpack.c.l.b16 %v532
    %v617 = vunpack.c.h.b16 %v532
    %v618 = vunpack.c.l.b16 %v533
    %v619 = vunpack.c.h.b16 %v533
    %v620 = vunpack.c.l.b16 %v534
    %v621 = vunpack.c.h.b16 %v534
    %v622 = vunpack.c.l.b16 %v535
    %v623 = vunpack.c.h.b16 %v535
    %v624 = vunpack.c.l.b16 %v536
    %v625 = vunpack.c.h.b16 %v536
    %v626 = vunpack.c.l.b16 %v537
    %v627 = vunpack.c.h.b16 %v537
    %v628 = vunpack.c.l.b16 %v538
    %v629 = vunpack.c.h.b16 %v538
    %v630 = vunpack.c.l.b16 %v539
    %v631 = vunpack.c.h.b16 %v539
    %v632 = vunpack.c.l.b16 %v540
    %v633 = vunpack.c.h.b16 %v540
    %v634 = vunpack.c.l.b16 %v541
    %v635 = vunpack.c.h.b16 %v541
    %v636 = vunpack.c.l.b16 %v542
    %v637 = vunpack.c.h.b16 %v542
    %v638 = vunpack.c.l.b16 %v543
    %v639 = vunpack.c.h.b16 %v543
    %v640 = vunpack.c.l.b16 %v544
    %v641 = vunpack.c.h.b16 %v544
    %v642 = vunpack.c.l.b16 %v545
    %v643 = vunpack.c.h.b16 %v545
    %v644 = vunpack.c.l.b16 %v546
    %v645 = vunpack.c.h.b16 %v546
    %v646 = vunpack.c.l.b16 %v547
    %v647 = vunpack.c.h.b16 %v547
    %v648 = vunpack.c.l.b16 %v548
    %v649 = vunpack.c.h.b16 %v548
    %v650 = vunpack.c.l.b16 %v549
    %v651 = vunpack.c.h.b16 %v549
    %v652 = vunpack.c.l.b16 %v550
    %v653 = vunpack.c.h.b16 %v550
    %v654 = vunpack.c.l.b16 %v551
    %v655 = vunpack.c.h.b16 %v551
    %v656 = vunpack.c.l.b16 %v552
    %v657 = vunpack.c.h.b16 %v552
    %v658 = vunpack.c.l.b16 %v553
    %v659 = vunpack.c.h.b16 %v553
    %v660 = vunpack.c.l.b16 %v554
    %v661 = vunpack.c.h.b16 %v554
    %v662 = vunpack.c.l.b16 %v555
    %v663 = vunpack.c.h.b16 %v555
    %v664 = vunpack.c.l.b16 %v556
    %v665 = vunpack.c.h.b16 %v556
    %v666 = vunpack.c.l.b16 %v557
    %v667 = vunpack.c.h.b16 %v557
    %v668 = vunpack.c.l.b16 %v558
    %v669 = vunpack.c.h.b16 %v558
    %v670 = vpack.c.b16 %v608, %v606
    %v671 = vpack.c.b16 %v609, %v607
    %v672 = vpack.c.b16 %v612, %v610
    %v673 = vpack.c.b16 %v613, %v611
    %v674 = vpack.c.b16 %v616, %v614
    %v675 = vpack.c.b16 %v617, %v615
    %v676 = vpack.c.b16 %v620, %v618
    %v677 = vpack.c.b16 %v621, %v619
    %v678 = vpack.c.b16 %v624, %v622
    %v679 = vpack.c.b16 %v625, %v623
    %v680 = vpack.c.b16 %v628, %v626
    %v681 = vpack.c.b16 %v629, %v627
    %v682 = vpack.c.b16 %v632, %v630
    %v683 = vpack.c.b16 %v633, %v631
    %v684 = vpack.c.b16 %v636, %v634
    %v685 = vpack.c.b16 %v637, %v635
    %v686 = vpack.c.b16 %v640, %v638
    %v687 = vpack.c.b16 %v641, %v639
    %v688 = vpack.c.b16 %v644, %v642
    %v689 = vpack.c.b16 %v645, %v643
    %v690 = vpack.c.b16 %v648, %v646
    %v691 = vpack.c.b16 %v649, %v647
    %v692 = vpack.c.b16 %v652, %v650
    %v693 = vpack.c.b16 %v653, %v651
    %v694 = vpack.c.b16 %v656, %v654
    %v695 = vpack.c.b16 %v657, %v655
    %v696 = vpack.c.b16 %v660, %v658
    %v697 = vpack.c.b16 %v661, %v659
    %v698 = vpack.c.b16 %v664, %v662
    %v699 = vpack.c.b16 %v665, %v663
    %v700 = vpack.c.b16 %v668, %v666
    %v701 = vpack.c.b16 %v669, %v667
    %734 = vmatprep.subr.bf16.mxu0 %v671
    %735 = vmatpush1.bf16.msra.mxu0 %v670
    %736 = vmatprep.subr.bf16.mxu0 %v673
    %737 = vmatpush1.bf16.msra.mxu0 %v672
    %738 = vmatprep.subr.bf16.mxu0 %v675
    %739 = vmatpush1.bf16.msra.mxu0 %v674
    %740 = vmatprep.subr.bf16.mxu0 %v677
    %741 = vmatpush1.bf16.msra.mxu0 %v676
    %742 = vmatprep.subr.bf16.mxu0 %v679
    %743 = vmatpush1.bf16.msra.mxu0 %v678
    %744 = vmatprep.subr.bf16.mxu0 %v681
    %745 = vmatpush1.bf16.msra.mxu0 %v680
    %746 = vmatprep.subr.bf16.mxu0 %v683
    %747 = vmatpush1.bf16.msra.mxu0 %v682
    %748 = vmatprep.subr.bf16.mxu0 %v685
    %749 = vmatpush1.bf16.msra.mxu0 %v684
    %750 = vmatprep.subr.bf16.mxu0 %v687
    %751 = vmatpush1.bf16.msra.mxu0 %v686
    %752 = vmatprep.subr.bf16.mxu0 %v689
    %753 = vmatpush1.bf16.msra.mxu0 %v688
    %754 = vmatprep.subr.bf16.mxu0 %v691
    %755 = vmatpush1.bf16.msra.mxu0 %v690
    %756 = vmatprep.subr.bf16.mxu0 %v693
    %757 = vmatpush1.bf16.msra.mxu0 %v692
    %758 = vmatprep.subr.bf16.mxu0 %v695
    %759 = vmatpush1.bf16.msra.mxu0 %v694
    %760 = vmatprep.subr.bf16.mxu0 %v697
    %761 = vmatpush1.bf16.msra.mxu0 %v696
    %762 = vmatprep.subr.bf16.mxu0 %v699
    %763 = vmatpush1.bf16.msra.mxu0 %v698
    %764 = vmatprep.subr.bf16.mxu0 %v701
    %765 = vmatpush1.bf16.msra.mxu0 %v700
    %766 = vmatprep.mubr.bf16.mxu0 %v562
    %767 = vmatmul.mubr.bf16.gmra.mrb[0].mxu0 %v561
    %v768 = vpop.f32.mrb[0].mxu0
    %v769 = vadd.f32 %v567, %v768
    %v770 = vpop.f32.mrb[0].mxu0
    %v771 = vadd.f32 %v571, %v770
    %v772 = vpop.f32.mrb[0].mxu0
    %v773 = vpop.f32.mrb[0].mxu0
    %774 = vdwg.mxu0
    %775 = vst [vmem:[%s3] sm:$0xff] %v769
    %776 = vst [vmem:[%s3 + $0x8] sm:$0xff] %v771
    // Predicated region
    $region18: #{network_forward.1} parent=1 // pred_check
      _
    $region19: #{network_forward.1} parent=1 // pred_check_branch
      %778 = sbr.rel (0) target = $region21
    $region20: #{network_forward.1} parent=1 // pred_region
      _
    $region21: #{network_forward.1} parent=1 // pred_fallthru
      _
    // Predicated region
    $region22: #{network_forward.1} parent=1 // pred_check
      _
    $region23: #{network_forward.1} parent=1 // pred_check_branch
      %780 = sbr.rel (0) target = $region25
    $region24: #{network_forward.1} parent=1 // pred_region
      _
    $region25: #{network_forward.1} parent=1 // pred_fallthru
      _
    %781 = vsyncpa [#allocation3], 1

</llo_original>
